<compile_context>
chip_gen: v6e
topology: v6e:2x2x1
jax: 0.10.0
libtpu: 0.0.40
codegen_flags: <defaults>
</compile_context>

<pallas_src>
import functools

import jax
import jax.numpy as jnp
from jax.experimental import pallas as pl
from jax.experimental.pallas import tpu as pltpu

IN_DIM = 28 * 28          # 784
HIDDEN_LAYER_1 = 50
HIDDEN_LAYER_2 = 50
EMBEDDING_DIM = 50
PAD_DIM = 128             # lane-dense padded feature width for all hidden/output dims


def _round_up(n, m):
    return ((n + m - 1) // m) * m


def _encoder_kernel(x_ref, w1_ref, b1_ref, w2_ref, b2_ref, w3_ref, b3_ref, o_ref):
    # One batch tile per grid step: three MXU matmuls (bf16 in, f32 acc) with
    # f32 VPU/EUP tanh epilogues.  Weights/biases have constant index_maps so
    # they stay VMEM-resident; only x / out stream from HBM per step.
    #
    # x arrives in f32 (its producer dtype) and is cast to bf16 on the VPU here,
    # hidden under the x DMA -- no separate XLA astype pass in HBM.
    x = x_ref[...].astype(jnp.bfloat16)          # (TM, 784) bf16

    b1 = b1_ref[...]                             # (1, 128) f32, hoisted once per tile
    b2 = b2_ref[...]
    b3 = b3_ref[...]

    h1 = jnp.dot(x, w1_ref[...], preferred_element_type=jnp.float32) + b1
    h1 = jnp.tanh(h1)                            # f32 epilogue

    h2 = jnp.dot(h1.astype(jnp.bfloat16), w2_ref[...],
                 preferred_element_type=jnp.float32) + b2
    h2 = jnp.tanh(h2)                            # f32 epilogue

    out = jnp.dot(h2.astype(jnp.bfloat16), w3_ref[...],
                  preferred_element_type=jnp.float32) + b3
    o_ref[...] = out.astype(o_ref.dtype)         # lane-dense (TM, 128) store


def prepare_params(params):
    """One-time prep: pad feature dims 50 -> 128 lanes (zeros) and cast weights
    to bf16.  Do this once at init, NOT on every forward call."""
    def pad_w(w, out_pad, in_pad=None):
        fi, fo = w.shape
        pi = (in_pad - fi) if in_pad is not None else 0
        return jnp.pad(w, ((0, pi), (0, out_pad - fo))).astype(jnp.bfloat16)

    def pad_b(b, out_pad):
        return jnp.pad(b, ((0, 0), (0, out_pad - b.shape[1]))).astype(jnp.float32)

    return {
        "w1": pad_w(params["w1"], PAD_DIM),                     # (784, 128) bf16
        "w2": pad_w(params["w2"], PAD_DIM, in_pad=PAD_DIM),     # (128, 128) bf16
        "w3": pad_w(params["w3"], PAD_DIM, in_pad=PAD_DIM),     # (128, 128) bf16
        "b1": pad_b(params["b1"], PAD_DIM),                     # (1, 128) f32
        "b2": pad_b(params["b2"], PAD_DIM),
        "b3": pad_b(params["b3"], PAD_DIM),
    }


@functools.partial(jax.jit, static_argnames=("tm",))
def encoder_forward(x, prepared, *, tm=2048):
    """x: (B, 784) float32.  prepared: output of prepare_params().

    Returns (B, 50) float32, matching torch's fc3(tanh(fc2(tanh(fc1(x))))).
    """
    B = x.shape[0]

    # ---- batch tiling: no whole-array pad; ragged last tile via cdiv grid ----
    tm_eff = min(tm, _round_up(B, 8))
    # v7x has 2 TensorCores and the "parallel" grid axis is sharded across
    # them: guarantee >= 2 balanced steps whenever there's enough work.
    if B > 512:
        tm_eff = min(tm_eff, _round_up(-(-B // 2), 8))
    grid = (pl.cdiv(B, tm_eff),)

    w1, b1 = prepared["w1"], prepared["b1"]
    w2, b2 = prepared["w2"], prepared["b2"]
    w3, b3 = prepared["w3"], prepared["b3"]

    full_const = lambda shape: pl.BlockSpec(shape, lambda i: (0,) * len(shape))

    # ---- scheduler hints: cost estimate + right-sized VMEM limit ----
    flops = 2 * B * (IN_DIM * PAD_DIM + 2 * PAD_DIM * PAD_DIM)
    transcendentals = 2 * B * PAD_DIM
    bytes_accessed = (
        B * IN_DIM * 4                                         # x (f32, streamed once)
        + (IN_DIM * PAD_DIM + 2 * PAD_DIM * PAD_DIM) * 2       # weights (bf16, resident)
        + 3 * PAD_DIM * 4                                      # biases (f32)
        + B * PAD_DIM * 4                                      # out (f32)
    )
    cost = pl.CostEstimate(flops=flops, transcendentals=transcendentals,
                           bytes_accessed=bytes_accessed)

    # Per-step VMEM: double-buffered f32 x/out tiles, the in-kernel bf16 x copy,
    # f32 + bf16 h1/h2 intermediates, and the resident weights.  1.5x headroom,
    # capped at 48 MiB so it fits v7x's 64 MiB per-TC VMEM.
    bytes_x_dbuf = 2 * tm_eff * IN_DIM * 4
    bytes_out_dbuf = 2 * tm_eff * PAD_DIM * 4
    bytes_interm = tm_eff * (IN_DIM * 2 + PAD_DIM * (4 + 2) * 2)
    bytes_w = (IN_DIM * PAD_DIM + 2 * PAD_DIM * PAD_DIM) * 2 + 3 * PAD_DIM * 4
    vmem_limit = int(min(max(1.5 * (bytes_x_dbuf + bytes_out_dbuf
                                    + bytes_interm + bytes_w),
                             16 * 1024 * 1024),
                         48 * 1024 * 1024))

    out_full = pl.pallas_call(
        _encoder_kernel,
        out_shape=jax.ShapeDtypeStruct((B, PAD_DIM), jnp.float32),
        grid=grid,
        in_specs=[
            pl.BlockSpec((tm_eff, IN_DIM), lambda i: (i, 0)),   # x: streamed per tile (f32)
            full_const(w1.shape), full_const(b1.shape),          # weights/biases: resident
            full_const(w2.shape), full_const(b2.shape),
            full_const(w3.shape), full_const(b3.shape),
        ],
        out_specs=pl.BlockSpec((tm_eff, PAD_DIM), lambda i: (i, 0)),
        compiler_params=pltpu.CompilerParams(
            dimension_semantics=("parallel",),                   # megacore sharding on v7x
            vmem_limit_bytes=vmem_limit,
        ),
        cost_estimate=cost,
    )(x, w1, b1, w2, b2, w3, b3)

    # Kernel stores lane-dense 128-wide rows; return the 50 real features.
    # (Consumers that can accept the padded 128-lane layout should use
    # out_full directly and skip this slice.)
    return out_full[:, :EMBEDDING_DIM]


def init_params(key):
    """Deterministic PyTorch-style init: U(-1/sqrt(fan_in), 1/sqrt(fan_in)).
    Weights stored transposed as (in, out); biases as (1, out), all float32."""
    def linear(key, fan_in, fan_out):
        kw, kb = jax.random.split(key)
        bound = 1.0 / jnp.sqrt(fan_in)
        w = jax.random.uniform(kw, (fan_in, fan_out), jnp.float32, -bound, bound)
        b = jax.random.uniform(kb, (1, fan_out), jnp.float32, -bound, bound)
        return w, b

    k1, k2, k3 = jax.random.split(key, 3)
    w1, b1 = linear(k1, IN_DIM, HIDDEN_LAYER_1)
    w2, b2 = linear(k2, HIDDEN_LAYER_1, HIDDEN_LAYER_2)
    w3, b3 = linear(k3, HIDDEN_LAYER_2, EMBEDDING_DIM)
    return {"w1": w1, "b1": b1, "w2": w2, "b2": b2, "w3": w3, "b3": b3}


def encoder_reference(x, p):
    """Pure-JAX f32 reference of the PyTorch forward."""
    h1 = jnp.tanh(x @ p["w1"] + p["b1"])
    h2 = jnp.tanh(h1 @ p["w2"] + p["b2"])
    return h2 @ p["w3"] + p["b3"]


if __name__ == "__main__":
    key = jax.random.PRNGKey(0)
    k_x, k_p = jax.random.split(key)

    B = 32
    x = jax.random.normal(k_x, (B, IN_DIM), jnp.float32)   # flattened 28x28 MNIST-like input
    params = init_params(k_p)
    prepared = prepare_params(params)                       # one-time pad + bf16 cast

    out = jax.block_until_ready(encoder_forward(x, prepared))

    ref = encoder_reference(x, params)
    assert out.shape == (B, EMBEDDING_DIM)
    # bf16 matmul operands with f32 accumulation: allow small numeric drift.
    max_err = float(jnp.max(jnp.abs(out - ref)))
    assert max_err < 5e-2, f"mismatch vs reference (max abs err {max_err})"

    print("KERNEL_OK")
</pallas_src>

<mosaic_0001>
module attributes {stable_mosaic.version = 11 : i64} {
  func.func @_encoder_kernel(%arg0: i32, %arg1: memref<32x784xf32, #tpu.memory_space<vmem>>, %arg2: memref<784x128xbf16, #tpu.memory_space<vmem>>, %arg3: memref<1x128xf32, #tpu.memory_space<vmem>>, %arg4: memref<128x128xbf16, #tpu.memory_space<vmem>>, %arg5: memref<1x128xf32, #tpu.memory_space<vmem>>, %arg6: memref<128x128xbf16, #tpu.memory_space<vmem>>, %arg7: memref<1x128xf32, #tpu.memory_space<vmem>>, %arg8: memref<32x128xf32, #tpu.memory_space<vmem>>) attributes {dimension_semantics = [#tpu.dimension_semantics<parallel>], iteration_bounds = array<i64: 1>, scalar_prefetch = 0 : i64, scratch_operands = 0 : i64, tpu.core_type = #tpu.core_type<tc>, window_params = [{transform_indices = @transform_0, window_bounds = array<i64: 32, 784>}, {pipeline_mode = #tpu.pipeline_mode<synchronous>, transform_indices = @transform_1, window_bounds = array<i64: 784, 128>}, {pipeline_mode = #tpu.pipeline_mode<synchronous>, transform_indices = @transform_2, window_bounds = array<i64: 1, 128>}, {pipeline_mode = #tpu.pipeline_mode<synchronous>, transform_indices = @transform_3, window_bounds = array<i64: 128, 128>}, {pipeline_mode = #tpu.pipeline_mode<synchronous>, transform_indices = @transform_4, window_bounds = array<i64: 1, 128>}, {pipeline_mode = #tpu.pipeline_mode<synchronous>, transform_indices = @transform_5, window_bounds = array<i64: 128, 128>}, {pipeline_mode = #tpu.pipeline_mode<synchronous>, transform_indices = @transform_6, window_bounds = array<i64: 1, 128>}, {transform_indices = @transform_7, window_bounds = array<i64: 32, 128>}]} {
    %c0 = arith.constant 0 : index
    %c0_0 = arith.constant 0 : index
    %0 = vector.load %arg1[%c0, %c0_0] : memref<32x784xf32, #tpu.memory_space<vmem>>, vector<32x784xf32>
    %1 = arith.truncf %0 : vector<32x784xf32> to vector<32x784xbf16>
    %c0_1 = arith.constant 0 : index
    %c0_2 = arith.constant 0 : index
    %2 = vector.load %arg3[%c0_1, %c0_2] : memref<1x128xf32, #tpu.memory_space<vmem>>, vector<1x128xf32>
    %c0_3 = arith.constant 0 : index
    %c0_4 = arith.constant 0 : index
    %3 = vector.load %arg5[%c0_3, %c0_4] : memref<1x128xf32, #tpu.memory_space<vmem>>, vector<1x128xf32>
    %c0_5 = arith.constant 0 : index
    %c0_6 = arith.constant 0 : index
    %4 = vector.load %arg7[%c0_5, %c0_6] : memref<1x128xf32, #tpu.memory_space<vmem>>, vector<1x128xf32>
    %c0_7 = arith.constant 0 : index
    %c0_8 = arith.constant 0 : index
    %5 = vector.load %arg2[%c0_7, %c0_8] : memref<784x128xbf16, #tpu.memory_space<vmem>>, vector<784x128xbf16>
    %cst = arith.constant dense<0.000000e+00> : vector<32x128xf32>
    %6 = tpu.matmul %1, %5, %cst {dimension_numbers = #tpu.dot_dimension_numbers<[1], [0], [0], [1], [0, 0, 1, 1], [], []>} : vector<32x784xbf16>, vector<784x128xbf16>, vector<32x128xf32> -> vector<32x128xf32>
    %7 = vector.broadcast %2 : vector<1x128xf32> to vector<32x128xf32>
    %8 = arith.addf %6, %7 : vector<32x128xf32>
    %9 = math.tanh %8 : vector<32x128xf32>
    %10 = arith.truncf %9 : vector<32x128xf32> to vector<32x128xbf16>
    %c0_9 = arith.constant 0 : index
    %c0_10 = arith.constant 0 : index
    %11 = vector.load %arg4[%c0_9, %c0_10] : memref<128x128xbf16, #tpu.memory_space<vmem>>, vector<128x128xbf16>
    %cst_11 = arith.constant dense<0.000000e+00> : vector<32x128xf32>
    %12 = tpu.matmul %10, %11, %cst_11 {dimension_numbers = #tpu.dot_dimension_numbers<[1], [0], [0], [1], [0, 0, 1, 1], [], []>} : vector<32x128xbf16>, vector<128x128xbf16>, vector<32x128xf32> -> vector<32x128xf32>
    %13 = vector.broadcast %3 : vector<1x128xf32> to vector<32x128xf32>
    %14 = arith.addf %12, %13 : vector<32x128xf32>
    %15 = math.tanh %14 : vector<32x128xf32>
    %16 = arith.truncf %15 : vector<32x128xf32> to vector<32x128xbf16>
    %c0_12 = arith.constant 0 : index
    %c0_13 = arith.constant 0 : index
    %17 = vector.load %arg6[%c0_12, %c0_13] : memref<128x128xbf16, #tpu.memory_space<vmem>>, vector<128x128xbf16>
    %cst_14 = arith.constant dense<0.000000e+00> : vector<32x128xf32>
    %18 = tpu.matmul %16, %17, %cst_14 {dimension_numbers = #tpu.dot_dimension_numbers<[1], [0], [0], [1], [0, 0, 1, 1], [], []>} : vector<32x128xbf16>, vector<128x128xbf16>, vector<32x128xf32> -> vector<32x128xf32>
    %19 = vector.broadcast %4 : vector<1x128xf32> to vector<32x128xf32>
    %20 = arith.addf %18, %19 : vector<32x128xf32>
    %c0_15 = arith.constant 0 : index
    %c0_16 = arith.constant 0 : index
    %21 = vector.load %arg8[%c0_15, %c0_16] : memref<32x128xf32, #tpu.memory_space<vmem>>, vector<32x128xf32>
    tpu.vector_store %arg8[%c0_15, %c0_16], %20 {strides = array<i32>} : memref<32x128xf32, #tpu.memory_space<vmem>>, vector<32x128xf32>,
    return
  }
  func.func @transform_0(%arg0: i32) -> (i32, i32) {
    %c0_i32 = arith.constant 0 : i32
    %c0_i32_0 = arith.constant 0 : i32
    return %arg0, %c0_i32 : i32, i32
  }
  func.func @transform_1(%arg0: i32) -> (i32, i32) {
    %c0_i32 = arith.constant 0 : i32
    %c0_i32_0 = arith.constant 0 : i32
    %c0_i32_1 = arith.constant 0 : i32
    return %c0_i32, %c0_i32_0 : i32, i32
  }
  func.func @transform_2(%arg0: i32) -> (i32, i32) {
    %c0_i32 = arith.constant 0 : i32
    %c0_i32_0 = arith.constant 0 : i32
    %c0_i32_1 = arith.constant 0 : i32
    return %c0_i32, %c0_i32_0 : i32, i32
  }
  func.func @transform_3(%arg0: i32) -> (i32, i32) {
    %c0_i32 = arith.constant 0 : i32
    %c0_i32_0 = arith.constant 0 : i32
    %c0_i32_1 = arith.constant 0 : i32
    return %c0_i32, %c0_i32_0 : i32, i32
  }
  func.func @transform_4(%arg0: i32) -> (i32, i32) {
    %c0_i32 = arith.constant 0 : i32
    %c0_i32_0 = arith.constant 0 : i32
    %c0_i32_1 = arith.constant 0 : i32
    return %c0_i32, %c0_i32_0 : i32, i32
  }
  func.func @transform_5(%arg0: i32) -> (i32, i32) {
    %c0_i32 = arith.constant 0 : i32
    %c0_i32_0 = arith.constant 0 : i32
    %c0_i32_1 = arith.constant 0 : i32
    return %c0_i32, %c0_i32_0 : i32, i32
  }
  func.func @transform_6(%arg0: i32) -> (i32, i32) {
    %c0_i32 = arith.constant 0 : i32
    %c0_i32_0 = arith.constant 0 : i32
    %c0_i32_1 = arith.constant 0 : i32
    return %c0_i32, %c0_i32_0 : i32, i32
  }
  func.func @transform_7(%arg0: i32) -> (i32, i32) {
    %c0_i32 = arith.constant 0 : i32
    %c0_i32_0 = arith.constant 0 : i32
    return %arg0, %c0_i32 : i32, i32
  }
}

</mosaic_0001>

<llo_original>
// kernel: encoder_forward.1
$region0: #{encoder_forward.1}
  #allocation0 [shape = 'u32[]', space=smem, size = 0x4, offset = 0x4, fixed_abs, tag = 'smem constant byte address 0x4 - core index']
  #allocation1 [shape = 'u32[144,128]{1,0:T(1,128)}', space=vmem, size = 0x12000, scoped, tag = 'internal scratch']
  %s0 = inlined_call_operand.hbm [shape: f32[32,784], index: 0, kind: input, shape index: {}]
  %s1 = inlined_call_operand.hbm [shape: bf16[784,128], index: 1, kind: input, shape index: {}]
  %s2 = inlined_call_operand.vmem [shape: f32[1,128], index: 2, kind: input, shape index: {}]
  %s3 = inlined_call_operand.hbm [shape: bf16[128,128], index: 3, kind: input, shape index: {}]
  %s4 = inlined_call_operand.vmem [shape: f32[1,128], index: 4, kind: input, shape index: {}]
  %s5 = inlined_call_operand.hbm [shape: bf16[128,128], index: 5, kind: input, shape index: {}]
  %s6 = inlined_call_operand.vmem [shape: f32[1,128], index: 6, kind: input, shape index: {}]
  %s7 = inlined_call_operand.hbm [shape: f32[32,128], index: 7, kind: output, shape index: {}]
  %s8 = sld [smem:[#allocation0]]
  $region54: #{encoder_forward.1} parent=0
    _
  %s10 = ssub.s32 1, %s8
  %s11 = scalar_select 0, %s10, %s8
  $region1: #{encoder_forward.1} parent=0
    #allocation2 [shape = 'u8[114688]{0}', space=vmem, size = 0x1c000, scoped, tag = 'input window, operand 0, single buffered']
    #allocation3 [shape = 's32[1]{0}', space=sflag, size = 0x4, scoped, tag = 'scoped memory for encoder_forward.1']
    #allocation4 [shape = 's32[1]{0}', space=sflag, size = 0x4, scoped, tag = 'scoped memory for encoder_forward.1']
    #allocation5 [shape = 'u8[200704]{0}', space=vmem, size = 0x31000, scoped, tag = 'input window, operand 1, single buffered']
    #allocation6 [shape = 's32[1]{0}', space=sflag, size = 0x4, scoped, tag = 'scoped memory for encoder_forward.1']
    #allocation7 [shape = 'u8[32768]{0}', space=vmem, size = 0x8000, scoped, tag = 'input window, operand 3, single buffered']
    #allocation8 [shape = 'u8[32768]{0}', space=vmem, size = 0x8000, scoped, tag = 'input window, operand 5, single buffered']
    #allocation9 [shape = 's32[1]{0}', space=sflag, size = 0x4, scoped, tag = 'scoped memory for encoder_forward.1']
    #allocation10 [shape = 'u8[16384]{0}', space=vmem, size = 0x4000, scoped, tag = 'output window, operand 0, single buffered']
    %12 = vsyncpa [#allocation3], 0
    %13 = vsyncpa [#allocation6], 0
    %14 = vsyncpa [#allocation9], 0
    %15 = vsyncpa [#allocation4], 0
    // Predicated region
    $region2: #{encoder_forward.1} parent=1 // pred_check
      _
    $region3: #{encoder_forward.1} parent=1 // pred_check_branch
      %17 = sbr.rel (0) target = $region5
    $region4: #{encoder_forward.1} parent=1 // pred_region
      %s19 = ssub.s32 3584, 3584
      %20 = vsyncadd [#allocation3], %s19
      %s21 = sshll.u32 [#allocation2], 4
      %s22 = int_to_ptr.vmem [resolvable:$true] %s21
      %27 = dma.hbm_to_vmem [thread:$0]  %s0, 3584, %s22, [#allocation3], 896, 896, 56
    $region5: #{encoder_forward.1} parent=1 // pred_fallthru
      _
    // Predicated region
    $region6: #{encoder_forward.1} parent=1 // pred_check
      _
    $region7: #{encoder_forward.1} parent=1 // pred_check_branch
      %29 = sbr.rel (0) target = $region9
    $region8: #{encoder_forward.1} parent=1 // pred_region
      %s31 = ssub.s32 6272, 6272
      %32 = vsyncadd [#allocation6], %s31
      %s33 = sshll.u32 [#allocation5], 4
      %s34 = int_to_ptr.vmem [resolvable:$true] %s33
      %39 = dma.hbm_to_vmem [thread:$0]  %s1, 6272, %s34, [#allocation6], 64, 64, 4
    $region9: #{encoder_forward.1} parent=1 // pred_fallthru
      _
    // Predicated region
    $region10: #{encoder_forward.1} parent=1 // pred_check
      _
    $region11: #{encoder_forward.1} parent=1 // pred_check_branch
      %41 = sbr.rel (0) target = $region13
    $region12: #{encoder_forward.1} parent=1 // pred_region
      _
    $region13: #{encoder_forward.1} parent=1 // pred_fallthru
      _
    // Predicated region
    $region14: #{encoder_forward.1} parent=1 // pred_check
      _
    $region15: #{encoder_forward.1} parent=1 // pred_check_branch
      %43 = sbr.rel (0) target = $region17
    $region16: #{encoder_forward.1} parent=1 // pred_region
      %s45 = ssub.s32 1024, 1024
      %46 = vsyncadd [#allocation6], %s45
      %s47 = sshll.u32 [#allocation7], 4
      %s48 = int_to_ptr.vmem [resolvable:$true] %s47
      %53 = dma.hbm_to_vmem [thread:$0]  %s3, 1024, %s48, [#allocation6], 64, 64, 4
    $region17: #{encoder_forward.1} parent=1 // pred_fallthru
      _
    // Predicated region
    $region18: #{encoder_forward.1} parent=1 // pred_check
      _
    $region19: #{encoder_forward.1} parent=1 // pred_check_branch
      %55 = sbr.rel (0) target = $region21
    $region20: #{encoder_forward.1} parent=1 // pred_region
      _
    $region21: #{encoder_forward.1} parent=1 // pred_fallthru
      _
    // Predicated region
    $region22: #{encoder_forward.1} parent=1 // pred_check
      _
    $region23: #{encoder_forward.1} parent=1 // pred_check_branch
      %57 = sbr.rel (0) target = $region25
    $region24: #{encoder_forward.1} parent=1 // pred_region
      %s59 = ssub.s32 1024, 1024
      %60 = vsyncadd [#allocation9], %s59
      %s61 = sshll.u32 [#allocation8], 4
      %s62 = int_to_ptr.vmem [resolvable:$true] %s61
      %67 = dma.hbm_to_vmem [thread:$0]  %s5, 1024, %s62, [#allocation9], 64, 64, 4
    $region25: #{encoder_forward.1} parent=1 // pred_fallthru
      _
    // Predicated region
    $region26: #{encoder_forward.1} parent=1 // pred_check
      _
    $region27: #{encoder_forward.1} parent=1 // pred_check_branch
      %69 = sbr.rel (0) target = $region29
    $region28: #{encoder_forward.1} parent=1 // pred_region
      _
    $region29: #{encoder_forward.1} parent=1 // pred_fallthru
      _
    // Predicated region
    $region30: #{encoder_forward.1} parent=1 // pred_check
      _
    $region31: #{encoder_forward.1} parent=1 // pred_check_branch
      %71 = sbr.rel (0) target = $region33
    $region32: #{encoder_forward.1} parent=1 // pred_region
      %72 = dma.done [#allocation3], 3584
    $region33: #{encoder_forward.1} parent=1 // pred_fallthru
      _
    // Predicated region
    $region34: #{encoder_forward.1} parent=1 // pred_check
      _
    $region35: #{encoder_forward.1} parent=1 // pred_check_branch
      %74 = sbr.rel (0) target = $region37
    $region36: #{encoder_forward.1} parent=1 // pred_region
      %75 = dma.done [#allocation6], 6272
    $region37: #{encoder_forward.1} parent=1 // pred_fallthru
      _
    // Predicated region
    $region38: #{encoder_forward.1} parent=1 // pred_check
      _
    $region39: #{encoder_forward.1} parent=1 // pred_check_branch
      %77 = sbr.rel (0) target = $region41
    $region40: #{encoder_forward.1} parent=1 // pred_region
      %78 = dma.done [#allocation6], 1024
    $region41: #{encoder_forward.1} parent=1 // pred_fallthru
      _
    // Predicated region
    $region42: #{encoder_forward.1} parent=1 // pred_check
      _
    $region43: #{encoder_forward.1} parent=1 // pred_check_branch
      %80 = sbr.rel (0) target = $region45
    $region44: #{encoder_forward.1} parent=1 // pred_region
      %81 = dma.done [#allocation9], 1024
    $region45: #{encoder_forward.1} parent=1 // pred_fallthru
      _
    %v83 = vld [vmem:[#allocation2] sm:$0xff]
    %v84 = vld [vmem:[#allocation2 + $0x8] sm:$0xff]
    %v85 = vld [vmem:[#allocation2 + $0x10] sm:$0xff]
    %v86 = vld [vmem:[#allocation2 + $0x18] sm:$0xff]
    %v87 = vld [vmem:[#allocation2 + $0x20] sm:$0xff]
    %v88 = vld [vmem:[#allocation2 + $0x28] sm:$0xff]
    %v89 = vld [vmem:[#allocation2 + $0x30] sm:$0xff]
    %v90 = vld [vmem:[#allocation2 + $0x38] sm:$0xff]
    %v91 = vld [vmem:[#allocation2 + $0x40] sm:$0xff]
    %v92 = vld [vmem:[#allocation2 + $0x48] sm:$0xff]
    %v93 = vld [vmem:[#allocation2 + $0x50] sm:$0xff]
    %v94 = vld [vmem:[#allocation2 + $0x58] sm:$0xff]
    %v95 = vld [vmem:[#allocation2 + $0x60] sm:$0xff]
    %v96 = vld [vmem:[#allocation2 + $0x68] sm:$0xff]
    %v97 = vld [vmem:[#allocation2 + $0x70] sm:$0xff]
    %v98 = vld [vmem:[#allocation2 + $0x78] sm:$0xff]
    %v99 = vld [vmem:[#allocation2 + $0x80] sm:$0xff]
    %v100 = vld [vmem:[#allocation2 + $0x88] sm:$0xff]
    %v101 = vld [vmem:[#allocation2 + $0x90] sm:$0xff]
    %v102 = vld [vmem:[#allocation2 + $0x98] sm:$0xff]
    %v103 = vld [vmem:[#allocation2 + $0xa0] sm:$0xff]
    %v104 = vld [vmem:[#allocation2 + $0xa8] sm:$0xff]
    %v105 = vld [vmem:[#allocation2 + $0xb0] sm:$0xff]
    %v106 = vld [vmem:[#allocation2 + $0xb8] sm:$0xff]
    %v107 = vld [vmem:[#allocation2 + $0xc0] sm:$0xff]
    %v108 = vld [vmem:[#allocation2 + $0xc8] sm:$0xff]
    %v109 = vld [vmem:[#allocation2 + $0xd0] sm:$0xff]
    %v110 = vld [vmem:[#allocation2 + $0xd8] sm:$0xff]
    %v111 = vpack.c.bf16 %v90, %v83
    %v112 = vpack.c.bf16 %v91, %v84
    %v113 = vpack.c.bf16 %v92, %v85
    %v114 = vpack.c.bf16 %v93, %v86
    %v115 = vpack.c.bf16 %v94, %v87
    %v116 = vpack.c.bf16 %v95, %v88
    %v117 = vpack.c.bf16 %v96, %v89
    %v118 = vpack.c.bf16 %v104, %v97
    %v119 = vpack.c.bf16 %v105, %v98
    %v120 = vpack.c.bf16 %v106, %v99
    %v121 = vpack.c.bf16 %v107, %v100
    %v122 = vpack.c.bf16 %v108, %v101
    %v123 = vpack.c.bf16 %v109, %v102
    %v124 = vpack.c.bf16 %v110, %v103
    %v125 = vld [vmem:[%s2] sm:$0x1]
    %v126 = vld [vmem:[%s4] sm:$0x1]
    %v127 = vld [vmem:[%s6] sm:$0x1]
    %v128 = vld [vmem:[#allocation5] sm:$0xf]
    %v129 = vld [vmem:[#allocation5 + $0x4] sm:$0xf]
    %v130 = vld [vmem:[#allocation5 + $0x8] sm:$0xf]
    %v131 = vld [vmem:[#allocation5 + $0xc] sm:$0xf]
    %v132 = vld [vmem:[#allocation5 + $0x10] sm:$0xf]
    %v133 = vld [vmem:[#allocation5 + $0x14] sm:$0xf]
    %v134 = vld [vmem:[#allocation5 + $0x18] sm:$0xf]
    %v135 = vld [vmem:[#allocation5 + $0x1c] sm:$0xf]
    %v136 = vld [vmem:[#allocation5 + $0x20] sm:$0xf]
    %v137 = vld [vmem:[#allocation5 + $0x24] sm:$0xf]
    %v138 = vld [vmem:[#allocation5 + $0x28] sm:$0xf]
    %v139 = vld [vmem:[#allocation5 + $0x2c] sm:$0xf]
    %v140 = vld [vmem:[#allocation5 + $0x30] sm:$0xf]
    %v141 = vld [vmem:[#allocation5 + $0x34] sm:$0xf]
    %v142 = vld [vmem:[#allocation5 + $0x38] sm:$0xf]
    %v143 = vld [vmem:[#allocation5 + $0x3c] sm:$0xf]
    %v144 = vld [vmem:[#allocation5 + $0x40] sm:$0xf]
    %v145 = vld [vmem:[#allocation5 + $0x44] sm:$0xf]
    %v146 = vld [vmem:[#allocation5 + $0x48] sm:$0xf]
    %v147 = vld [vmem:[#allocation5 + $0x4c] sm:$0xf]
    %v148 = vld [vmem:[#allocation5 + $0x50] sm:$0xf]
    %v149 = vld [vmem:[#allocation5 + $0x54] sm:$0xf]
    %v150 = vld [vmem:[#allocation5 + $0x58] sm:$0xf]
    %v151 = vld [vmem:[#allocation5 + $0x5c] sm:$0xf]
    %v152 = vld [vmem:[#allocation5 + $0x60] sm:$0xf]
    %v153 = vld [vmem:[#allocation5 + $0x64] sm:$0xf]
    %v154 = vld [vmem:[#allocation5 + $0x68] sm:$0xf]
    %v155 = vld [vmem:[#allocation5 + $0x6c] sm:$0xf]
    %v156 = vld [vmem:[#allocation5 + $0x70] sm:$0xf]
    %v157 = vld [vmem:[#allocation5 + $0x74] sm:$0xf]
    %v158 = vld [vmem:[#allocation5 + $0x78] sm:$0xf]
    %v159 = vld [vmem:[#allocation5 + $0x7c] sm:$0xf]
    %v160 = vld [vmem:[#allocation5 + $0x80] sm:$0xf]
    %v161 = vld [vmem:[#allocation5 + $0x84] sm:$0xf]
    %v162 = vld [vmem:[#allocation5 + $0x88] sm:$0xf]
    %v163 = vld [vmem:[#allocation5 + $0x8c] sm:$0xf]
    %v164 = vld [vmem:[#allocation5 + $0x90] sm:$0xf]
    %v165 = vld [vmem:[#allocation5 + $0x94] sm:$0xf]
    %v166 = vld [vmem:[#allocation5 + $0x98] sm:$0xf]
    %v167 = vld [vmem:[#allocation5 + $0x9c] sm:$0xf]
    %v168 = vld [vmem:[#allocation5 + $0xa0] sm:$0xf]
    %v169 = vld [vmem:[#allocation5 + $0xa4] sm:$0xf]
    %v170 = vld [vmem:[#allocation5 + $0xa8] sm:$0xf]
    %v171 = vld [vmem:[#allocation5 + $0xac] sm:$0xf]
    %v172 = vld [vmem:[#allocation5 + $0xb0] sm:$0xf]
    %v173 = vld [vmem:[#allocation5 + $0xb4] sm:$0xf]
    %v174 = vld [vmem:[#allocation5 + $0xb8] sm:$0xf]
    %v175 = vld [vmem:[#allocation5 + $0xbc] sm:$0xf]
    %v176 = vld [vmem:[#allocation5 + $0xc0] sm:$0xf]
    %v177 = vld [vmem:[#allocation5 + $0xc4] sm:$0xf]
    %v178 = vld [vmem:[#allocation5 + $0xc8] sm:$0xf]
    %v179 = vld [vmem:[#allocation5 + $0xcc] sm:$0xf]
    %v180 = vld [vmem:[#allocation5 + $0xd0] sm:$0xf]
    %v181 = vld [vmem:[#allocation5 + $0xd4] sm:$0xf]
    %v182 = vld [vmem:[#allocation5 + $0xd8] sm:$0xf]
    %v183 = vld [vmem:[#allocation5 + $0xdc] sm:$0xf]
    %v184 = vld [vmem:[#allocation5 + $0xe0] sm:$0xf]
    %v185 = vld [vmem:[#allocation5 + $0xe4] sm:$0xf]
    %v186 = vld [vmem:[#allocation5 + $0xe8] sm:$0xf]
    %v187 = vld [vmem:[#allocation5 + $0xec] sm:$0xf]
    %v188 = vld [vmem:[#allocation5 + $0xf0] sm:$0xf]
    %v189 = vld [vmem:[#allocation5 + $0xf4] sm:$0xf]
    %v190 = vld [vmem:[#allocation5 + $0xf8] sm:$0xf]
    %v191 = vld [vmem:[#allocation5 + $0xfc] sm:$0xf]
    %v192 = vld [vmem:[#allocation5 + $0x100] sm:$0xf]
    %v193 = vld [vmem:[#allocation5 + $0x104] sm:$0xf]
    %v194 = vld [vmem:[#allocation5 + $0x108] sm:$0xf]
    %v195 = vld [vmem:[#allocation5 + $0x10c] sm:$0xf]
    %v196 = vld [vmem:[#allocation5 + $0x110] sm:$0xf]
    %v197 = vld [vmem:[#allocation5 + $0x114] sm:$0xf]
    %v198 = vld [vmem:[#allocation5 + $0x118] sm:$0xf]
    %v199 = vld [vmem:[#allocation5 + $0x11c] sm:$0xf]
    %v200 = vld [vmem:[#allocation5 + $0x120] sm:$0xf]
    %v201 = vld [vmem:[#allocation5 + $0x124] sm:$0xf]
    %v202 = vld [vmem:[#allocation5 + $0x128] sm:$0xf]
    %v203 = vld [vmem:[#allocation5 + $0x12c] sm:$0xf]
    %v204 = vld [vmem:[#allocation5 + $0x130] sm:$0xf]
    %v205 = vld [vmem:[#allocation5 + $0x134] sm:$0xf]
    %v206 = vld [vmem:[#allocation5 + $0x138] sm:$0xf]
    %v207 = vld [vmem:[#allocation5 + $0x13c] sm:$0xf]
    %v208 = vld [vmem:[#allocation5 + $0x140] sm:$0xf]
    %v209 = vld [vmem:[#allocation5 + $0x144] sm:$0xf]
    %v210 = vld [vmem:[#allocation5 + $0x148] sm:$0xf]
    %v211 = vld [vmem:[#allocation5 + $0x14c] sm:$0xf]
    %v212 = vld [vmem:[#allocation5 + $0x150] sm:$0xf]
    %v213 = vld [vmem:[#allocation5 + $0x154] sm:$0xf]
    %v214 = vld [vmem:[#allocation5 + $0x158] sm:$0xf]
    %v215 = vld [vmem:[#allocation5 + $0x15c] sm:$0xf]
    %v216 = vld [vmem:[#allocation5 + $0x160] sm:$0xf]
    %v217 = vld [vmem:[#allocation5 + $0x164] sm:$0xf]
    %v218 = vld [vmem:[#allocation5 + $0x168] sm:$0xf]
    %v219 = vld [vmem:[#allocation5 + $0x16c] sm:$0xf]
    %v220 = vld [vmem:[#allocation5 + $0x170] sm:$0xf]
    %v221 = vld [vmem:[#allocation5 + $0x174] sm:$0xf]
    %v222 = vld [vmem:[#allocation5 + $0x178] sm:$0xf]
    %v223 = vld [vmem:[#allocation5 + $0x17c] sm:$0xf]
    %v224 = vld [vmem:[#allocation5 + $0x180] sm:$0xf]
    %v225 = vld [vmem:[#allocation5 + $0x184] sm:$0xf]
    %v227 = vlaneseq
    %v228 = vshrl.u32 %v227, 7
    %v229 = vsub.s32 0, %v228
    %v230 = vrot.slane %v125, %v229
    %v330 = vunpack.c.l.b16 %v128
    %v331 = vunpack.c.l.b16 %v129
    %v332 = vunpack.c.l.b16 %v130
    %v333 = vunpack.c.l.b16 %v131
    %v334 = vunpack.c.l.b16 %v132
    %v335 = vunpack.c.l.b16 %v133
    %v336 = vunpack.c.l.b16 %v134
    %v337 = vunpack.c.l.b16 %v135
    %v338 = vunpack.c.l.b16 %v136
    %v339 = vunpack.c.l.b16 %v137
    %v340 = vunpack.c.l.b16 %v138
    %v341 = vunpack.c.l.b16 %v139
    %v342 = vunpack.c.l.b16 %v140
    %v343 = vunpack.c.l.b16 %v141
    %v344 = vunpack.c.l.b16 %v142
    %v345 = vunpack.c.l.b16 %v143
    %v346 = vunpack.c.l.b16 %v144
    %v347 = vunpack.c.l.b16 %v145
    %v348 = vunpack.c.l.b16 %v146
    %v349 = vunpack.c.l.b16 %v147
    %v350 = vunpack.c.l.b16 %v148
    %v351 = vunpack.c.l.b16 %v149
    %v352 = vunpack.c.l.b16 %v150
    %v353 = vunpack.c.l.b16 %v151
    %v354 = vunpack.c.l.b16 %v152
    %v355 = vunpack.c.l.b16 %v153
    %v356 = vunpack.c.l.b16 %v154
    %v357 = vunpack.c.l.b16 %v155
    %v358 = vunpack.c.l.b16 %v156
    %v359 = vunpack.c.l.b16 %v157
    %v360 = vunpack.c.l.b16 %v158
    %v361 = vunpack.c.l.b16 %v159
    %v362 = vunpack.c.l.b16 %v160
    %v363 = vunpack.c.l.b16 %v161
    %v364 = vunpack.c.l.b16 %v162
    %v365 = vunpack.c.l.b16 %v163
    %v366 = vunpack.c.l.b16 %v164
    %v367 = vunpack.c.l.b16 %v165
    %v368 = vunpack.c.l.b16 %v166
    %v369 = vunpack.c.l.b16 %v167
    %v370 = vunpack.c.l.b16 %v168
    %v371 = vunpack.c.l.b16 %v169
    %v372 = vunpack.c.l.b16 %v170
    %v373 = vunpack.c.l.b16 %v171
    %v374 = vunpack.c.l.b16 %v172
    %v375 = vunpack.c.l.b16 %v173
    %v376 = vunpack.c.l.b16 %v174
    %v377 = vunpack.c.l.b16 %v175
    %v378 = vunpack.c.l.b16 %v176
    %v379 = vunpack.c.l.b16 %v177
    %v380 = vunpack.c.l.b16 %v178
    %v381 = vunpack.c.l.b16 %v179
    %v382 = vunpack.c.l.b16 %v180
    %v383 = vunpack.c.l.b16 %v181
    %v384 = vunpack.c.l.b16 %v182
    %v385 = vunpack.c.l.b16 %v183
    %v386 = vunpack.c.l.b16 %v184
    %v387 = vunpack.c.l.b16 %v185
    %v388 = vunpack.c.l.b16 %v186
    %v389 = vunpack.c.l.b16 %v187
    %v390 = vunpack.c.l.b16 %v188
    %v391 = vunpack.c.l.b16 %v189
    %v392 = vunpack.c.l.b16 %v190
    %v393 = vunpack.c.l.b16 %v191
    %v394 = vunpack.c.l.b16 %v192
    %v395 = vunpack.c.l.b16 %v193
    %v396 = vunpack.c.l.b16 %v194
    %v397 = vunpack.c.l.b16 %v195
    %v398 = vunpack.c.l.b16 %v196
    %v399 = vunpack.c.l.b16 %v197
    %v400 = vunpack.c.l.b16 %v198
    %v401 = vunpack.c.l.b16 %v199
    %v402 = vunpack.c.l.b16 %v200
    %v403 = vunpack.c.l.b16 %v201
    %v404 = vunpack.c.l.b16 %v202
    %v405 = vunpack.c.l.b16 %v203
    %v406 = vunpack.c.l.b16 %v204
    %v407 = vunpack.c.l.b16 %v205
    %v408 = vunpack.c.l.b16 %v206
    %v409 = vunpack.c.l.b16 %v207
    %v410 = vunpack.c.l.b16 %v208
    %v411 = vunpack.c.l.b16 %v209
    %v412 = vunpack.c.l.b16 %v210
    %v413 = vunpack.c.l.b16 %v211
    %v414 = vunpack.c.l.b16 %v212
    %v415 = vunpack.c.l.b16 %v213
    %v416 = vunpack.c.l.b16 %v214
    %v417 = vunpack.c.l.b16 %v215
    %v418 = vunpack.c.l.b16 %v216
    %v419 = vunpack.c.l.b16 %v217
    %v420 = vunpack.c.l.b16 %v218
    %v421 = vunpack.c.l.b16 %v219
    %v422 = vunpack.c.l.b16 %v220
    %v423 = vunpack.c.l.b16 %v221
    %v424 = vunpack.c.l.b16 %v222
    %v425 = vunpack.c.l.b16 %v223
    %v426 = vunpack.c.l.b16 %v224
    %v427 = vunpack.c.l.b16 %v225
    %v428 = vpack.c.b16 %v331, %v330
    %v429 = vpack.c.b16 %v333, %v332
    %v430 = vpack.c.b16 %v335, %v334
    %v431 = vpack.c.b16 %v337, %v336
    %v432 = vpack.c.b16 %v339, %v338
    %v433 = vpack.c.b16 %v341, %v340
    %v434 = vpack.c.b16 %v343, %v342
    %v435 = vpack.c.b16 %v345, %v344
    %v436 = vpack.c.b16 %v347, %v346
    %v437 = vpack.c.b16 %v349, %v348
    %v438 = vpack.c.b16 %v351, %v350
    %v439 = vpack.c.b16 %v353, %v352
    %v440 = vpack.c.b16 %v355, %v354
    %v441 = vpack.c.b16 %v357, %v356
    %v442 = vpack.c.b16 %v359, %v358
    %v443 = vpack.c.b16 %v361, %v360
    %v444 = vpack.c.b16 %v363, %v362
    %v445 = vpack.c.b16 %v365, %v364
    %v446 = vpack.c.b16 %v367, %v366
    %v447 = vpack.c.b16 %v369, %v368
    %v448 = vpack.c.b16 %v371, %v370
    %v449 = vpack.c.b16 %v373, %v372
    %v450 = vpack.c.b16 %v375, %v374
    %v451 = vpack.c.b16 %v377, %v376
    %v452 = vpack.c.b16 %v379, %v378
    %v453 = vpack.c.b16 %v381, %v380
    %v454 = vpack.c.b16 %v383, %v382
    %v455 = vpack.c.b16 %v385, %v384
    %v456 = vpack.c.b16 %v387, %v386
    %v457 = vpack.c.b16 %v389, %v388
    %v458 = vpack.c.b16 %v391, %v390
    %v459 = vpack.c.b16 %v393, %v392
    %v460 = vpack.c.b16 %v395, %v394
    %v461 = vpack.c.b16 %v397, %v396
    %v462 = vpack.c.b16 %v399, %v398
    %v463 = vpack.c.b16 %v401, %v400
    %v464 = vpack.c.b16 %v403, %v402
    %v465 = vpack.c.b16 %v405, %v404
    %v466 = vpack.c.b16 %v407, %v406
    %v467 = vpack.c.b16 %v409, %v408
    %v468 = vpack.c.b16 %v411, %v410
    %v469 = vpack.c.b16 %v413, %v412
    %v470 = vpack.c.b16 %v415, %v414
    %v471 = vpack.c.b16 %v417, %v416
    %v472 = vpack.c.b16 %v419, %v418
    %v473 = vpack.c.b16 %v421, %v420
    %v474 = vpack.c.b16 %v423, %v422
    %v475 = vpack.c.b16 %v425, %v424
    %v476 = vpack.c.b16 %v427, %v426
    %vm526 = vcmask 130048
    %v528 = vsel %vm526, %v117, 0
    %v531 = vsel %vm526, %v124, 0
    %533 = vmatprep.subr.bf16.mxu0 0
    %534 = vmatpush1.bf16.msra.mxu0 %v435
    %535 = vmatprep.subr.bf16.mxu0 0
    %536 = vmatpush1.bf16.msra.mxu0 %v434
    %537 = vmatprep.subr.bf16.mxu0 0
    %538 = vmatpush1.bf16.msra.mxu0 %v433
    %539 = vmatprep.subr.bf16.mxu0 0
    %540 = vmatpush1.bf16.msra.mxu0 %v432
    %541 = vmatprep.subr.bf16.mxu0 0
    %542 = vmatpush1.bf16.msra.mxu0 %v431
    %543 = vmatprep.subr.bf16.mxu0 0
    %544 = vmatpush1.bf16.msra.mxu0 %v430
    %545 = vmatprep.subr.bf16.mxu0 0
    %546 = vmatpush1.bf16.msra.mxu0 %v429
    %547 = vmatprep.subr.bf16.mxu0 0
    %548 = vmatpush1.bf16.msra.mxu0 %v428
    %549 = vmatprep.subr.bf16.mxu0 0
    %550 = vmatpush2.bf16.msra.mxu0 %v443
    %551 = vmatprep.subr.bf16.mxu0 0
    %552 = vmatpush2.bf16.msra.mxu0 %v442
    %553 = vmatprep.subr.bf16.mxu0 0
    %554 = vmatpush2.bf16.msra.mxu0 %v441
    %555 = vmatprep.subr.bf16.mxu0 0
    %556 = vmatpush2.bf16.msra.mxu0 %v440
    %557 = vmatprep.subr.bf16.mxu0 0
    %558 = vmatpush2.bf16.msra.mxu0 %v439
    %559 = vmatprep.subr.bf16.mxu0 0
    %560 = vmatpush2.bf16.msra.mxu0 %v438
    %561 = vmatprep.subr.bf16.mxu0 0
    %562 = vmatpush2.bf16.msra.mxu0 %v437
    %563 = vmatprep.subr.bf16.mxu0 0
    %564 = vmatpush2.bf16.msra.mxu0 %v436
    %565 = vmatprep.mubr.bf16.mxu0 %v112
    %566 = vmatmul.mubr.bf16.gmra.mxu0 %v111
    %v567 = vpop.f32.mrf.mxu0
    %v568 = vadd.f32 %v230, %v567
    %v569 = vpop.f32.mrf.mxu0
    %v570 = vpop.f32.mrf.mxu0
    %v571 = vadd.f32 %v230, %v570
    %v572 = vpop.f32.mrf.mxu0
    %573 = vmatprep.mubr.bf16.mxu0 %v119
    %574 = vmatmul.mubr.bf16.gmra.mxu0 %v118
    %v575 = vpop.f32.mrf.mxu0
    %v576 = vadd.f32 %v230, %v575
    %v577 = vpop.f32.mrf.mxu0
    %v578 = vpop.f32.mrf.mxu0
    %v579 = vadd.f32 %v230, %v578
    %v580 = vpop.f32.mrf.mxu0
    %581 = vdwg.mxu0
    %582 = vmatprep.subr.bf16.mxu0 0
    %583 = vmatpush1.bf16.msra.mxu0 %v451
    %584 = vmatprep.subr.bf16.mxu0 0
    %585 = vmatpush1.bf16.msra.mxu0 %v450
    %586 = vmatprep.subr.bf16.mxu0 0
    %587 = vmatpush1.bf16.msra.mxu0 %v449
    %588 = vmatprep.subr.bf16.mxu0 0
    %589 = vmatpush1.bf16.msra.mxu0 %v448
    %590 = vmatprep.subr.bf16.mxu0 0
    %591 = vmatpush1.bf16.msra.mxu0 %v447
    %592 = vmatprep.subr.bf16.mxu0 0
    %593 = vmatpush1.bf16.msra.mxu0 %v446
    %594 = vmatprep.subr.bf16.mxu0 0
    %595 = vmatpush1.bf16.msra.mxu0 %v445
    %596 = vmatprep.subr.bf16.mxu0 0
    %597 = vmatpush1.bf16.msra.mxu0 %v444
    %598 = vmatprep.subr.bf16.mxu0 0
    %599 = vmatpush2.bf16.msra.mxu0 %v459
    %600 = vmatprep.subr.bf16.mxu0 0
    %601 = vmatpush2.bf16.msra.mxu0 %v458
    %602 = vmatprep.subr.bf16.mxu0 0
    %603 = vmatpush2.bf16.msra.mxu0 %v457
    %604 = vmatprep.subr.bf16.mxu0 0
    %605 = vmatpush2.bf16.msra.mxu0 %v456
    %606 = vmatprep.subr.bf16.mxu0 0
    %607 = vmatpush2.bf16.msra.mxu0 %v455
    %608 = vmatprep.subr.bf16.mxu0 0
    %609 = vmatpush2.bf16.msra.mxu0 %v454
    %610 = vmatprep.subr.bf16.mxu0 0
    %611 = vmatpush2.bf16.msra.mxu0 %v453
    %612 = vmatprep.subr.bf16.mxu0 0
    %613 = vmatpush2.bf16.msra.mxu0 %v452
    %614 = vmatprep.mubr.bf16.mxu0 %v114
    %615 = vmatmul.mubr.bf16.gmra.mxu0 %v113
    %v616 = vpop.f32.mrf.mxu0
    %v617 = vadd.f32 %v568, %v616
    %v618 = vpop.f32.mrf.mxu0
    %v619 = vpop.f32.mrf.mxu0
    %v620 = vadd.f32 %v571, %v619
    %v621 = vpop.f32.mrf.mxu0
    %622 = vmatprep.mubr.bf16.mxu0 %v121
    %623 = vmatmul.mubr.bf16.gmra.mxu0 %v120
    %v624 = vpop.f32.mrf.mxu0
    %v625 = vadd.f32 %v576, %v624
    %v626 = vpop.f32.mrf.mxu0
    %v627 = vpop.f32.mrf.mxu0
    %v628 = vadd.f32 %v579, %v627
    %v629 = vpop.f32.mrf.mxu0
    %630 = vdwg.mxu0
    %631 = vmatprep.subr.bf16.mxu0 0
    %632 = vmatpush1.bf16.msra.mxu0 %v467
    %633 = vmatprep.subr.bf16.mxu0 0
    %634 = vmatpush1.bf16.msra.mxu0 %v466
    %635 = vmatprep.subr.bf16.mxu0 0
    %636 = vmatpush1.bf16.msra.mxu0 %v465
    %637 = vmatprep.subr.bf16.mxu0 0
    %638 = vmatpush1.bf16.msra.mxu0 %v464
    %639 = vmatprep.subr.bf16.mxu0 0
    %640 = vmatpush1.bf16.msra.mxu0 %v463
    %641 = vmatprep.subr.bf16.mxu0 0
    %642 = vmatpush1.bf16.msra.mxu0 %v462
    %643 = vmatprep.subr.bf16.mxu0 0
    %644 = vmatpush1.bf16.msra.mxu0 %v461
    %645 = vmatprep.subr.bf16.mxu0 0
    %646 = vmatpush1.bf16.msra.mxu0 %v460
    %647 = vmatprep.subr.bf16.mxu0 0
    %648 = vmatpush2.bf16.msra.mxu0 %v475
    %649 = vmatprep.subr.bf16.mxu0 0
    %650 = vmatpush2.bf16.msra.mxu0 %v474
    %651 = vmatprep.subr.bf16.mxu0 0
    %652 = vmatpush2.bf16.msra.mxu0 %v473
    %653 = vmatprep.subr.bf16.mxu0 0
    %654 = vmatpush2.bf16.msra.mxu0 %v472
    %655 = vmatprep.subr.bf16.mxu0 0
    %656 = vmatpush2.bf16.msra.mxu0 %v471
    %657 = vmatprep.subr.bf16.mxu0 0
    %658 = vmatpush2.bf16.msra.mxu0 %v470
    %659 = vmatprep.subr.bf16.mxu0 0
    %660 = vmatpush2.bf16.msra.mxu0 %v469
    %661 = vmatprep.subr.bf16.mxu0 0
    %662 = vmatpush2.bf16.msra.mxu0 %v468
    %663 = vmatprep.mubr.bf16.mxu0 %v116
    %664 = vmatmul.mubr.bf16.gmra.mxu0 %v115
    %v665 = vpop.f32.mrf.mxu0
    %v666 = vadd.f32 %v617, %v665
    %v667 = vpop.f32.mrf.mxu0
    %v668 = vpop.f32.mrf.mxu0
    %v669 = vadd.f32 %v620, %v668
    %v670 = vpop.f32.mrf.mxu0
    %671 = vmatprep.mubr.bf16.mxu0 %v123
    %672 = vmatmul.mubr.bf16.gmra.mxu0 %v122
    %v673 = vpop.f32.mrf.mxu0
    %v674 = vadd.f32 %v625, %v673
    %v675 = vpop.f32.mrf.mxu0
    %v676 = vpop.f32.mrf.mxu0
    %v677 = vadd.f32 %v628, %v676
    %v678 = vpop.f32.mrf.mxu0
    %679 = vdwg.mxu0
    %680 = vmatprep.subr.bf16.mxu0 0
    %681 = vmatpush1.bf16.msra.mxu0 0
    %682 = vmatprep.subr.bf16.mxu0 0
    %683 = vmatpush1.bf16.msra.mxu0 0
    %684 = vmatprep.subr.bf16.mxu0 0
    %685 = vmatpush1.bf16.msra.mxu0 0
    %686 = vmatprep.subr.bf16.mxu0 0
    %687 = vmatpush1.bf16.msra.mxu0 0
    %688 = vmatprep.subr.bf16.mxu0 0
    %689 = vmatpush1.bf16.msra.mxu0 0
    %690 = vmatprep.subr.bf16.mxu0 0
    %691 = vmatpush1.bf16.msra.mxu0 0
    %692 = vmatprep.subr.bf16.mxu0 0
    %693 = vmatpush1.bf16.msra.mxu0 0
    %694 = vmatprep.subr.bf16.mxu0 0
    %695 = vmatpush1.bf16.msra.mxu0 %v476
    %696 = vmatprep.subr.bf16.mxu0 0
    %697 = vmatpush2.bf16.msra.mxu0 0
    %698 = vmatprep.subr.bf16.mxu0 0
    %699 = vmatpush2.bf16.msra.mxu0 0
    %700 = vmatprep.subr.bf16.mxu0 0
    %701 = vmatpush2.bf16.msra.mxu0 0
    %702 = vmatprep.subr.bf16.mxu0 0
    %703 = vmatpush2.bf16.msra.mxu0 0
    %704 = vmatprep.subr.bf16.mxu0 0
    %705 = vmatpush2.bf16.msra.mxu0 0
    %706 = vmatprep.subr.bf16.mxu0 0
    %707 = vmatpush2.bf16.msra.mxu0 0
    %708 = vmatprep.subr.bf16.mxu0 0
    %709 = vmatpush2.bf16.msra.mxu0 0
    %710 = vmatprep.subr.bf16.mxu0 0
    %711 = vmatpush2.bf16.msra.mxu0 0
    %712 = vmatprep.mubr.bf16.mxu0 0
    %713 = vmatmul.mubr.bf16.gmra.mxu0 %v528
    %v714 = vpop.f32.mrf.mxu0
    %v715 = vadd.f32 %v666, %v714
    %v716 = vpop.f32.mrf.mxu0
    %v717 = vpop.f32.mrf.mxu0
    %v718 = vadd.f32 %v669, %v717
    %v719 = vpop.f32.mrf.mxu0
    %720 = vmatprep.mubr.bf16.mxu0 0
    %721 = vmatmul.mubr.bf16.gmra.mxu0 %v531
    %v722 = vpop.f32.mrf.mxu0
    %v723 = vadd.f32 %v674, %v722
    %v724 = vpop.f32.mrf.mxu0
    %v725 = vpop.f32.mrf.mxu0
    %v726 = vadd.f32 %v677, %v725
    %v727 = vpop.f32.mrf.mxu0
    %728 = vdwg.mxu0
    %v729 = vtanh.pop %v715
    %v730 = vtanh.pop %v718
    %v731 = vtanh.pop %v723
    %v732 = vtanh.pop %v726
    %v733 = vpack.c.bf16 %v730, %v729
    %v734 = vpack.c.bf16 %v732, %v731
    %v735 = vld [vmem:[#allocation7] sm:$0xf]
    %v736 = vld [vmem:[#allocation7 + $0x4] sm:$0xf]
    %v737 = vld [vmem:[#allocation7 + $0x8] sm:$0xf]
    %v738 = vld [vmem:[#allocation7 + $0xc] sm:$0xf]
    %v739 = vld [vmem:[#allocation7 + $0x10] sm:$0xf]
    %v740 = vld [vmem:[#allocation7 + $0x14] sm:$0xf]
    %v741 = vld [vmem:[#allocation7 + $0x18] sm:$0xf]
    %v742 = vld [vmem:[#allocation7 + $0x1c] sm:$0xf]
    %v743 = vld [vmem:[#allocation7 + $0x20] sm:$0xf]
    %v744 = vld [vmem:[#allocation7 + $0x24] sm:$0xf]
    %v745 = vld [vmem:[#allocation7 + $0x28] sm:$0xf]
    %v746 = vld [vmem:[#allocation7 + $0x2c] sm:$0xf]
    %v747 = vld [vmem:[#allocation7 + $0x30] sm:$0xf]
    %v748 = vld [vmem:[#allocation7 + $0x34] sm:$0xf]
    %v749 = vld [vmem:[#allocation7 + $0x38] sm:$0xf]
    %v750 = vld [vmem:[#allocation7 + $0x3c] sm:$0xf]
    %v752 = vlaneseq
    %v753 = vshrl.u32 %v752, 7
    %v754 = vsub.s32 0, %v753
    %v755 = vrot.slane %v126, %v754
    %v773 = vunpack.c.l.b16 %v735
    %v774 = vunpack.c.l.b16 %v736
    %v775 = vunpack.c.l.b16 %v737
    %v776 = vunpack.c.l.b16 %v738
    %v777 = vunpack.c.l.b16 %v739
    %v778 = vunpack.c.l.b16 %v740
    %v779 = vunpack.c.l.b16 %v741
    %v780 = vunpack.c.l.b16 %v742
    %v781 = vunpack.c.l.b16 %v743
    %v782 = vunpack.c.l.b16 %v744
    %v783 = vunpack.c.l.b16 %v745
    %v784 = vunpack.c.l.b16 %v746
    %v785 = vunpack.c.l.b16 %v747
    %v786 = vunpack.c.l.b16 %v748
    %v787 = vunpack.c.l.b16 %v749
    %v788 = vunpack.c.l.b16 %v750
    %v789 = vpack.c.b16 %v774, %v773
    %v790 = vpack.c.b16 %v776, %v775
    %v791 = vpack.c.b16 %v778, %v777
    %v792 = vpack.c.b16 %v780, %v779
    %v793 = vpack.c.b16 %v782, %v781
    %v794 = vpack.c.b16 %v784, %v783
    %v795 = vpack.c.b16 %v786, %v785
    %v796 = vpack.c.b16 %v788, %v787
    %805 = vmatprep.subr.bf16.mxu0 0
    %806 = vmatpush1.bf16.msra.mxu0 %v796
    %807 = vmatprep.subr.bf16.mxu0 0
    %808 = vmatpush1.bf16.msra.mxu0 %v795
    %809 = vmatprep.subr.bf16.mxu0 0
    %810 = vmatpush1.bf16.msra.mxu0 %v794
    %811 = vmatprep.subr.bf16.mxu0 0
    %812 = vmatpush1.bf16.msra.mxu0 %v793
    %813 = vmatprep.subr.bf16.mxu0 0
    %814 = vmatpush1.bf16.msra.mxu0 %v792
    %815 = vmatprep.subr.bf16.mxu0 0
    %816 = vmatpush1.bf16.msra.mxu0 %v791
    %817 = vmatprep.subr.bf16.mxu0 0
    %818 = vmatpush1.bf16.msra.mxu0 %v790
    %819 = vmatprep.subr.bf16.mxu0 0
    %820 = vmatpush1.bf16.msra.mxu0 %v789
    %821 = vmatprep.subr.bf16.mxu0 0
    %822 = vmatpush2.bf16.msra.mxu0 0
    %823 = vmatprep.subr.bf16.mxu0 0
    %824 = vmatpush2.bf16.msra.mxu0 0
    %825 = vmatprep.subr.bf16.mxu0 0
    %826 = vmatpush2.bf16.msra.mxu0 0
    %827 = vmatprep.subr.bf16.mxu0 0
    %828 = vmatpush2.bf16.msra.mxu0 0
    %829 = vmatprep.subr.bf16.mxu0 0
    %830 = vmatpush2.bf16.msra.mxu0 0
    %831 = vmatprep.subr.bf16.mxu0 0
    %832 = vmatpush2.bf16.msra.mxu0 0
    %833 = vmatprep.subr.bf16.mxu0 0
    %834 = vmatpush2.bf16.msra.mxu0 0
    %835 = vmatprep.subr.bf16.mxu0 0
    %836 = vmatpush2.bf16.msra.mxu0 0
    %837 = vmatprep.mubr.bf16.mxu0 0
    %838 = vmatmul.mubr.bf16.gmra.mxu0 %v733
    %v839 = vpop.f32.mrf.mxu0
    %v840 = vadd.f32 %v755, %v839
    %v841 = vpop.f32.mrf.mxu0
    %v842 = vpop.f32.mrf.mxu0
    %v843 = vadd.f32 %v755, %v842
    %v844 = vpop.f32.mrf.mxu0
    %845 = vmatprep.mubr.bf16.mxu0 0
    %846 = vmatmul.mubr.bf16.gmra.mxu0 %v734
    %v847 = vpop.f32.mrf.mxu0
    %v848 = vadd.f32 %v755, %v847
    %v849 = vpop.f32.mrf.mxu0
    %v850 = vpop.f32.mrf.mxu0
    %v851 = vadd.f32 %v755, %v850
    %v852 = vpop.f32.mrf.mxu0
    %853 = vdwg.mxu0
    %v854 = vtanh.pop %v840
    %v855 = vtanh.pop %v843
    %v856 = vtanh.pop %v848
    %v857 = vtanh.pop %v851
    %v858 = vpack.c.bf16 %v855, %v854
    %v859 = vpack.c.bf16 %v857, %v856
    %v860 = vld [vmem:[#allocation8] sm:$0xf]
    %v861 = vld [vmem:[#allocation8 + $0x4] sm:$0xf]
    %v862 = vld [vmem:[#allocation8 + $0x8] sm:$0xf]
    %v863 = vld [vmem:[#allocation8 + $0xc] sm:$0xf]
    %v864 = vld [vmem:[#allocation8 + $0x10] sm:$0xf]
    %v865 = vld [vmem:[#allocation8 + $0x14] sm:$0xf]
    %v866 = vld [vmem:[#allocation8 + $0x18] sm:$0xf]
    %v867 = vld [vmem:[#allocation8 + $0x1c] sm:$0xf]
    %v868 = vld [vmem:[#allocation8 + $0x20] sm:$0xf]
    %v869 = vld [vmem:[#allocation8 + $0x24] sm:$0xf]
    %v870 = vld [vmem:[#allocation8 + $0x28] sm:$0xf]
    %v871 = vld [vmem:[#allocation8 + $0x2c] sm:$0xf]
    %v872 = vld [vmem:[#allocation8 + $0x30] sm:$0xf]
    %v873 = vld [vmem:[#allocation8 + $0x34] sm:$0xf]
    %v874 = vld [vmem:[#allocation8 + $0x38] sm:$0xf]
    %v875 = vld [vmem:[#allocation8 + $0x3c] sm:$0xf]
    %v877 = vlaneseq
    %v878 = vshrl.u32 %v877, 7
    %v879 = vsub.s32 0, %v878
    %v880 = vrot.slane %v127, %v879
    %v898 = vunpack.c.l.b16 %v860
    %v899 = vunpack.c.l.b16 %v861
    %v900 = vunpack.c.l.b16 %v862
    %v901 = vunpack.c.l.b16 %v863
    %v902 = vunpack.c.l.b16 %v864
    %v903 = vunpack.c.l.b16 %v865
    %v904 = vunpack.c.l.b16 %v866
    %v905 = vunpack.c.l.b16 %v867
    %v906 = vunpack.c.l.b16 %v868
    %v907 = vunpack.c.l.b16 %v869
    %v908 = vunpack.c.l.b16 %v870
    %v909 = vunpack.c.l.b16 %v871
    %v910 = vunpack.c.l.b16 %v872
    %v911 = vunpack.c.l.b16 %v873
    %v912 = vunpack.c.l.b16 %v874
    %v913 = vunpack.c.l.b16 %v875
    %v914 = vpack.c.b16 %v899, %v898
    %v915 = vpack.c.b16 %v901, %v900
    %v916 = vpack.c.b16 %v903, %v902
    %v917 = vpack.c.b16 %v905, %v904
    %v918 = vpack.c.b16 %v907, %v906
    %v919 = vpack.c.b16 %v909, %v908
    %v920 = vpack.c.b16 %v911, %v910
    %v921 = vpack.c.b16 %v913, %v912
    %930 = vmatprep.subr.bf16.mxu0 0
    %931 = vmatpush1.bf16.msra.mxu0 %v921
    %932 = vmatprep.subr.bf16.mxu0 0
    %933 = vmatpush1.bf16.msra.mxu0 %v920
    %934 = vmatprep.subr.bf16.mxu0 0
    %935 = vmatpush1.bf16.msra.mxu0 %v919
    %936 = vmatprep.subr.bf16.mxu0 0
    %937 = vmatpush1.bf16.msra.mxu0 %v918
    %938 = vmatprep.subr.bf16.mxu0 0
    %939 = vmatpush1.bf16.msra.mxu0 %v917
    %940 = vmatprep.subr.bf16.mxu0 0
    %941 = vmatpush1.bf16.msra.mxu0 %v916
    %942 = vmatprep.subr.bf16.mxu0 0
    %943 = vmatpush1.bf16.msra.mxu0 %v915
    %944 = vmatprep.subr.bf16.mxu0 0
    %945 = vmatpush1.bf16.msra.mxu0 %v914
    %946 = vmatprep.subr.bf16.mxu0 0
    %947 = vmatpush2.bf16.msra.mxu0 0
    %948 = vmatprep.subr.bf16.mxu0 0
    %949 = vmatpush2.bf16.msra.mxu0 0
    %950 = vmatprep.subr.bf16.mxu0 0
    %951 = vmatpush2.bf16.msra.mxu0 0
    %952 = vmatprep.subr.bf16.mxu0 0
    %953 = vmatpush2.bf16.msra.mxu0 0
    %954 = vmatprep.subr.bf16.mxu0 0
    %955 = vmatpush2.bf16.msra.mxu0 0
    %956 = vmatprep.subr.bf16.mxu0 0
    %957 = vmatpush2.bf16.msra.mxu0 0
    %958 = vmatprep.subr.bf16.mxu0 0
    %959 = vmatpush2.bf16.msra.mxu0 0
    %960 = vmatprep.subr.bf16.mxu0 0
    %961 = vmatpush2.bf16.msra.mxu0 0
    %962 = vmatprep.mubr.bf16.mxu0 0
    %963 = vmatmul.mubr.bf16.gmra.mxu0 %v858
    %v964 = vpop.f32.mrf.mxu0
    %v965 = vadd.f32 %v880, %v964
    %v966 = vpop.f32.mrf.mxu0
    %v967 = vpop.f32.mrf.mxu0
    %v968 = vadd.f32 %v880, %v967
    %v969 = vpop.f32.mrf.mxu0
    %970 = vmatprep.mubr.bf16.mxu0 0
    %971 = vmatmul.mubr.bf16.gmra.mxu0 %v859
    %v972 = vpop.f32.mrf.mxu0
    %v973 = vadd.f32 %v880, %v972
    %v974 = vpop.f32.mrf.mxu0
    %v975 = vpop.f32.mrf.mxu0
    %v976 = vadd.f32 %v880, %v975
    %v977 = vpop.f32.mrf.mxu0
    %978 = vdwg.mxu0
    %979 = vst [vmem:[#allocation10] sm:$0xff] %v965
    %980 = vst [vmem:[#allocation10 + $0x8] sm:$0xff] %v968
    %981 = vst [vmem:[#allocation10 + $0x10] sm:$0xff] %v973
    %982 = vst [vmem:[#allocation10 + $0x18] sm:$0xff] %v976
    // Predicated region
    $region46: #{encoder_forward.1} parent=1 // pred_check
      _
    $region47: #{encoder_forward.1} parent=1 // pred_check_branch
      %984 = sbr.rel (0) target = $region49
    $region48: #{encoder_forward.1} parent=1 // pred_region
      %s986 = ssub.s32 512, 512
      %987 = vsyncadd [#allocation4], %s986
      %s988 = sshll.u32 [#allocation10], 4
      %s989 = int_to_ptr.vmem [resolvable:$true] %s988
      %994 = dma.vmem_to_hbm [thread:$0]  %s989, 512, %s7, [#allocation4], 128, 128, 8
    $region49: #{encoder_forward.1} parent=1 // pred_fallthru
      _
    // Predicated region
    $region50: #{encoder_forward.1} parent=1 // pred_check
      _
    $region51: #{encoder_forward.1} parent=1 // pred_check_branch
      %996 = sbr.rel (0) target = $region53
    $region52: #{encoder_forward.1} parent=1 // pred_region
      %997 = dma.done [#allocation4], 512
    $region53: #{encoder_forward.1} parent=1 // pred_fallthru
      _
    %998 = vsyncpa [#allocation3], 1
    %999 = vsyncpa [#allocation6], 1
    %1000 = vsyncpa [#allocation9], 1
    %1001 = vsyncpa [#allocation4], 1

</llo_original>
